<compile_context>
chip_gen: v7x
topology: tpu7x:2x2x1
jax: 0.10.0
libtpu: 0.0.40
codegen_flags: <defaults>
</compile_context>

<pallas_src>
import jax
import jax.numpy as jnp
from jax.experimental import pallas as pl
from jax.experimental.pallas import tpu as pltpu


def _round_up(x, m):
    return ((x + m - 1) // m) * m


# ------------------- host-side exact weight refolding -----------------------

def _fold_conv_into_first_linear(conv_w, conv_b, w1, b1, H, W, K):
    """Fold Conv2d(kernel=(K,1)) + NCHW flatten into the first Linear (exact)."""
    C_out, C_in = conv_w.shape[0], conv_w.shape[1]
    H_out = H - K + 1
    HW = H_out * W
    H1 = w1.shape[1]
    cw = conv_w[:, :, :, 0]                               # (C_out, C_in, K)
    w1_r = w1.reshape(C_out, HW, H1)                      # torch.flatten order
    # W1_fold[ci, k, hw, j] = sum_co cw[co, ci, k] * W1[co, hw, j]
    w1_fold = jnp.einsum("oik,ohj->ikhj", cw, w1_r)       # (C_in, K, HW, H1)
    # Scatter-add the K shifted copies so the contraction runs over the raw
    # (C_in, H*W) input layout — no im2col needed anywhere.
    w1_eff = jnp.zeros((C_in, H * W, H1), jnp.float32)
    for k in range(K):
        w1_eff = w1_eff.at[:, k * W:k * W + HW, :].add(w1_fold[:, k, :, :])
    w1_eff = w1_eff.reshape(C_in * H * W, H1)
    b1_eff = b1 + jnp.einsum("o,ohj->j", conv_b, w1_r)
    return w1_eff, b1_eff


# ----------------------------- Pallas kernel --------------------------------

def _make_mlp_kernel(n_layers):
    """Fused (Linear [+ReLU])* chain over one lane-dense batch block."""

    def kernel(*refs):
        x_ref = refs[0]
        wb = refs[1:1 + 2 * n_layers]            # (W1_eff, b1_eff, W2, b2, ...)
        o_ref = refs[1 + 2 * n_layers]

        h = x_ref[...]                           # (NB, D0), compute dtype
        for i in range(n_layers):
            w = wb[2 * i][...]                   # matmul operands in compute dtype
            b = wb[2 * i + 1][...]               # bias kept f32
            h = jnp.dot(h.astype(w.dtype), w,
                        preferred_element_type=jnp.float32) + b
            if i < n_layers - 1:
                h = jnp.maximum(h, 0.0)          # f32 VPU (safe on v5e too)
        o_ref[...] = h.astype(o_ref.dtype)

    return kernel


# ------------------------------ JAX wrapper ----------------------------------

def cnn_gradients_forward(x, conv_w, conv_b, mlp_weights, mlp_biases,
                          num_gradients, *, compute_dtype=jnp.bfloat16,
                          batch_block=None):
    """x: (N, C_in, H, W) f32. conv_w: (C_out, C_in, K, 1). conv_b: (C_out,)."""
    N, C_in, H, W = x.shape
    K = num_gradients

    # --- exact host-side refold of conv+flatten into the first Linear ---
    w1_eff, b1_eff = _fold_conv_into_first_linear(
        conv_w, conv_b, mlp_weights[0], mlp_biases[0], H, W, K)
    weights = [w1_eff] + list(mlp_weights[1:])
    biases = [b1_eff] + list(mlp_biases[1:])
    n_layers = len(weights)
    out_dim = weights[-1].shape[1]

    # Lane-pad the head so the output store is an unmasked vst (pad dropped below).
    out_pad = _round_up(out_dim, 128)
    if out_pad != out_dim:
        weights[-1] = jnp.pad(weights[-1], ((0, 0), (0, out_pad - out_dim)))
        biases[-1] = jnp.pad(biases[-1], ((0, out_pad - out_dim),))

    D0 = C_in * H * W
    x2d = x.reshape(N, D0).astype(compute_dtype)              # lane-dense input
    weights = [w.astype(compute_dtype) for w in weights]      # MXU operands bf16/f32
    biases = [b.reshape(1, -1).astype(jnp.float32) for b in biases]

    # Batch-block selection: sublane-aligned blocks; grid>=2 once N>8 so both
    # v7x TensorCores get work ("parallel" axis).
    if batch_block is None:
        batch_block = N if N <= 8 else min(256, _round_up(pl.cdiv(N, 2), 8))
    NB = min(batch_block, N)
    grid = (pl.cdiv(N, NB),)

    in_specs = [pl.BlockSpec((NB, D0), lambda i: (i, 0))]
    operands = [x2d]
    for w, b in zip(weights, biases):
        # TODO(synk): pipeline_mode=pl.Buffered(1) for these constant operands once
        # weight VMEM matters (v7x 64 MiB budget); tiny here.
        in_specs.append(pl.BlockSpec(w.shape, lambda i: (0, 0)))
        in_specs.append(pl.BlockSpec(b.shape, lambda i: (0, 0)))
        operands.extend([w, b])

    elt = jnp.dtype(compute_dtype).itemsize
    flops = 2 * N * sum(int(w.shape[0]) * int(w.shape[1]) for w in weights)
    bytes_accessed = (int(x2d.size) * elt
                      + sum(int(w.size) * elt for w in weights)
                      + sum(int(b.size) * 4 for b in biases)
                      + N * out_pad * 4)

    # Explicit VMEM budget: double-buffered x/out blocks + (double-buffered)
    # weights/biases + intermediate activations; capped at v7x's 64 MiB.
    resident = (2 * NB * D0 * elt + 2 * NB * out_pad * 4
                + 2 * sum(int(w.size) * elt for w in weights)
                + 2 * sum(int(b.size) * 4 for b in biases)
                + NB * max(int(w.shape[1]) for w in weights) * 4)
    vmem_limit = int(min(max(2 * resident, 32 << 20), 64 << 20))

    kernel = _make_mlp_kernel(n_layers)

    out_padded = pl.pallas_call(
        kernel,
        out_shape=jax.ShapeDtypeStruct((N, out_pad), jnp.float32),
        grid=grid,
        in_specs=in_specs,
        out_specs=pl.BlockSpec((NB, out_pad), lambda i: (i, 0)),
        cost_estimate=pl.CostEstimate(flops=flops, transcendentals=0,
                                      bytes_accessed=bytes_accessed),
        compiler_params=pltpu.CompilerParams(
            dimension_semantics=("parallel",),
            vmem_limit_bytes=vmem_limit),
    )(*operands)

    return out_padded[:, :out_dim]


# ------------------------------- reference -----------------------------------

def reference_forward(x, conv_w, conv_b, mlp_weights, mlp_biases, num_gradients):
    N, C_in, H, W = x.shape
    K = num_gradients
    H_out = H - K + 1
    patches5 = jnp.stack([x[:, :, k:k + H_out, :] for k in range(K)], axis=2)
    conv = jnp.einsum("nckhw,ock->nohw", patches5, conv_w[:, :, :, 0])
    conv = conv + conv_b[None, :, None, None]
    h = conv.reshape(N, -1)
    n_layers = len(mlp_weights)
    for i, (w, b) in enumerate(zip(mlp_weights, mlp_biases)):
        h = h @ w + b[None, :]
        if i < n_layers - 1:
            h = jnp.maximum(h, 0.0)
    return h


# --------------------------------- main ---------------------------------------

if __name__ == "__main__":
    # Module hyper-parameters (small, consistent with CNNGradients.__init__)
    num_in_channels = 4
    num_gradients = 3          # conv kernel height K
    num_out_channels = 8
    N, H, W = 2, 8, 16
    H_out = H - num_gradients + 1
    flat_dim = num_out_channels * H_out * W          # 8 * 6 * 16 = 768
    layer_sizes = [flat_dim, 32, 10]                 # GenericMLP: Linear+ReLU, Linear

    key = jax.random.PRNGKey(0)
    kx, kcw, kcb, *kl = jax.random.split(key, 4 + 2 * (len(layer_sizes) - 1))

    x = jax.random.normal(kx, (N, num_in_channels, H, W), dtype=jnp.float32)

    conv_w = 0.1 * jax.random.normal(
        kcw, (num_out_channels, num_in_channels, num_gradients, 1), dtype=jnp.float32)
    conv_b = 0.1 * jax.random.normal(kcb, (num_out_channels,), dtype=jnp.float32)

    mlp_weights, mlp_biases = [], []
    for i in range(len(layer_sizes) - 1):
        fan_in, fan_out = layer_sizes[i], layer_sizes[i + 1]
        kw, kb = kl[2 * i], kl[2 * i + 1]
        scale = 1.0 / jnp.sqrt(jnp.float32(fan_in))
        mlp_weights.append(scale * jax.random.normal(kw, (fan_in, fan_out), dtype=jnp.float32))
        mlp_biases.append(scale * jax.random.normal(kb, (fan_out,), dtype=jnp.float32))

    ref = reference_forward(x, conv_w, conv_b, mlp_weights, mlp_biases, num_gradients)

    # f32 path: tight correctness check.
    out_f32 = cnn_gradients_forward(x, conv_w, conv_b, mlp_weights, mlp_biases,
                                    num_gradients, compute_dtype=jnp.float32)
    out_f32 = jax.block_until_ready(out_f32)
    assert out_f32.shape == (N, layer_sizes[-1]), out_f32.shape
    assert jnp.allclose(out_f32, ref, atol=1e-4, rtol=1e-4), "f32 mismatch vs reference"

    # bf16-operand path (production setting): f32 accumulation, looser tolerance.
    out_bf16 = cnn_gradients_forward(x, conv_w, conv_b, mlp_weights, mlp_biases,
                                     num_gradients, compute_dtype=jnp.bfloat16)
    out_bf16 = jax.block_until_ready(out_bf16)
    assert out_bf16.shape == (N, layer_sizes[-1]), out_bf16.shape
    assert jnp.allclose(out_bf16, ref, atol=5e-2, rtol=5e-2), "bf16 mismatch vs reference"

    print("KERNEL_OK")
</pallas_src>

<mosaic_0001>
module attributes {stable_mosaic.version = 11 : i64} {
  func.func @kernel(%arg0: i32, %arg1: memref<2x512xf32, #tpu.memory_space<vmem>>, %arg2: memref<512x32xf32, #tpu.memory_space<vmem>>, %arg3: memref<1x32xf32, #tpu.memory_space<vmem>>, %arg4: memref<32x128xf32, #tpu.memory_space<vmem>>, %arg5: memref<1x128xf32, #tpu.memory_space<vmem>>, %arg6: memref<2x128xf32, #tpu.memory_space<vmem>>) attributes {dimension_semantics = [#tpu.dimension_semantics<parallel>], iteration_bounds = array<i64: 1>, scalar_prefetch = 0 : i64, scratch_operands = 0 : i64, tpu.core_type = #tpu.core_type<tc>, window_params = [{transform_indices = @transform_0, window_bounds = array<i64: 2, 512>}, {pipeline_mode = #tpu.pipeline_mode<synchronous>, transform_indices = @transform_1, window_bounds = array<i64: 512, 32>}, {pipeline_mode = #tpu.pipeline_mode<synchronous>, transform_indices = @transform_2, window_bounds = array<i64: 1, 32>}, {pipeline_mode = #tpu.pipeline_mode<synchronous>, transform_indices = @transform_3, window_bounds = array<i64: 32, 128>}, {pipeline_mode = #tpu.pipeline_mode<synchronous>, transform_indices = @transform_4, window_bounds = array<i64: 1, 128>}, {transform_indices = @transform_5, window_bounds = array<i64: 2, 128>}]} {
    %c0 = arith.constant 0 : index
    %c0_0 = arith.constant 0 : index
    %0 = vector.load %arg1[%c0, %c0_0] : memref<2x512xf32, #tpu.memory_space<vmem>>, vector<2x512xf32>
    %c0_1 = arith.constant 0 : index
    %c0_2 = arith.constant 0 : index
    %1 = vector.load %arg2[%c0_1, %c0_2] : memref<512x32xf32, #tpu.memory_space<vmem>>, vector<512x32xf32>
    %c0_3 = arith.constant 0 : index
    %c0_4 = arith.constant 0 : index
    %2 = vector.load %arg3[%c0_3, %c0_4] : memref<1x32xf32, #tpu.memory_space<vmem>>, vector<1x32xf32>
    %cst = arith.constant dense<0.000000e+00> : vector<2x32xf32>
    %3 = tpu.matmul %0, %1, %cst {dimension_numbers = #tpu.dot_dimension_numbers<[1], [0], [0], [1], [0, 0, 1, 1], [], []>} : vector<2x512xf32>, vector<512x32xf32>, vector<2x32xf32> -> vector<2x32xf32>
    %4 = vector.broadcast %2 : vector<1x32xf32> to vector<2x32xf32>
    %5 = arith.addf %3, %4 : vector<2x32xf32>
    %cst_5 = arith.constant 0.000000e+00 : f32
    %6 = vector.broadcast %cst_5 : f32 to vector<2x32xf32>
    %7 = arith.maximumf %5, %6 : vector<2x32xf32>
    %c0_6 = arith.constant 0 : index
    %c0_7 = arith.constant 0 : index
    %8 = vector.load %arg4[%c0_6, %c0_7] : memref<32x128xf32, #tpu.memory_space<vmem>>, vector<32x128xf32>
    %c0_8 = arith.constant 0 : index
    %c0_9 = arith.constant 0 : index
    %9 = vector.load %arg5[%c0_8, %c0_9] : memref<1x128xf32, #tpu.memory_space<vmem>>, vector<1x128xf32>
    %cst_10 = arith.constant dense<0.000000e+00> : vector<2x128xf32>
    %10 = tpu.matmul %7, %8, %cst_10 {dimension_numbers = #tpu.dot_dimension_numbers<[1], [0], [0], [1], [0, 0, 1, 1], [], []>} : vector<2x32xf32>, vector<32x128xf32>, vector<2x128xf32> -> vector<2x128xf32>
    %11 = vector.broadcast %9 : vector<1x128xf32> to vector<2x128xf32>
    %12 = arith.addf %10, %11 : vector<2x128xf32>
    %c0_11 = arith.constant 0 : index
    %c0_12 = arith.constant 0 : index
    %13 = vector.load %arg6[%c0_11, %c0_12] : memref<2x128xf32, #tpu.memory_space<vmem>>, vector<2x128xf32>
    tpu.vector_store %arg6[%c0_11, %c0_12], %12 {strides = array<i32>} : memref<2x128xf32, #tpu.memory_space<vmem>>, vector<2x128xf32>,
    return
  }
  func.func @transform_0(%arg0: i32) -> (i32, i32) {
    %c0_i32 = arith.constant 0 : i32
    %c0_i32_0 = arith.constant 0 : i32
    return %arg0, %c0_i32 : i32, i32
  }
  func.func @transform_1(%arg0: i32) -> (i32, i32) {
    %c0_i32 = arith.constant 0 : i32
    %c0_i32_0 = arith.constant 0 : i32
    %c0_i32_1 = arith.constant 0 : i32
    return %c0_i32, %c0_i32_0 : i32, i32
  }
  func.func @transform_2(%arg0: i32) -> (i32, i32) {
    %c0_i32 = arith.constant 0 : i32
    %c0_i32_0 = arith.constant 0 : i32
    %c0_i32_1 = arith.constant 0 : i32
    return %c0_i32, %c0_i32_0 : i32, i32
  }
  func.func @transform_3(%arg0: i32) -> (i32, i32) {
    %c0_i32 = arith.constant 0 : i32
    %c0_i32_0 = arith.constant 0 : i32
    %c0_i32_1 = arith.constant 0 : i32
    return %c0_i32, %c0_i32_0 : i32, i32
  }
  func.func @transform_4(%arg0: i32) -> (i32, i32) {
    %c0_i32 = arith.constant 0 : i32
    %c0_i32_0 = arith.constant 0 : i32
    %c0_i32_1 = arith.constant 0 : i32
    return %c0_i32, %c0_i32_0 : i32, i32
  }
  func.func @transform_5(%arg0: i32) -> (i32, i32) {
    %c0_i32 = arith.constant 0 : i32
    %c0_i32_0 = arith.constant 0 : i32
    return %arg0, %c0_i32 : i32, i32
  }
}

</mosaic_0001>

<llo_original>
// kernel: tpu_custom_call.1
$region0: #{tpu_custom_call.1}
  #allocation0 [shape = 'u32[]', space=smem, size = 0x4, offset = 0x4, fixed_abs, tag = 'smem constant byte address 0x4 - core index']
  #allocation1 [shape = 'u32[144,128]{1,0:T(1,128)}', space=vmem, size = 0x12000, scoped, tag = 'internal scratch']
  %s0 = inlined_call_operand.vmem [shape: f32[2,512], index: 0, kind: input, shape index: {}]
  %s1 = inlined_call_operand.vmem [shape: f32[512,32], index: 1, kind: input, shape index: {}]
  %s2 = inlined_call_operand.vmem [shape: f32[1,32], index: 2, kind: input, shape index: {}]
  %s3 = inlined_call_operand.vmem [shape: f32[32,128], index: 3, kind: input, shape index: {}]
  %s4 = inlined_call_operand.vmem [shape: f32[1,128], index: 4, kind: input, shape index: {}]
  %s5 = inlined_call_operand.hbm [shape: f32[2,128], index: 5, kind: output, shape index: {}]
  %s6 = sld [smem:[#allocation0]]
  $region30: #{tpu_custom_call.1} parent=0
    _
  %s8 = ssub.s32 1, %s6
  %s9 = scalar_select 0, %s8, %s6
  $region1: #{tpu_custom_call.1} parent=0
    #allocation2 [shape = 'u8[1024]{0}', space=vmem, size = 0x400, scoped, tag = 'output window, operand 0, single buffered']
    #allocation3 [shape = 's32[1]{0}', space=sflag, size = 0x4, scoped, tag = 'scoped memory for tpu_custom_call.1']
    %10 = vsyncpa [#allocation3], 0
    // Predicated region
    $region2: #{tpu_custom_call.1} parent=1 // pred_check
      _
    $region3: #{tpu_custom_call.1} parent=1 // pred_check_branch
      %12 = sbr.rel (0) target = $region5
    $region4: #{tpu_custom_call.1} parent=1 // pred_region
      _
    $region5: #{tpu_custom_call.1} parent=1 // pred_fallthru
      _
    // Predicated region
    $region6: #{tpu_custom_call.1} parent=1 // pred_check
      _
    $region7: #{tpu_custom_call.1} parent=1 // pred_check_branch
      %14 = sbr.rel (0) target = $region9
    $region8: #{tpu_custom_call.1} parent=1 // pred_region
      _
    $region9: #{tpu_custom_call.1} parent=1 // pred_fallthru
      _
    // Predicated region
    $region10: #{tpu_custom_call.1} parent=1 // pred_check
      _
    $region11: #{tpu_custom_call.1} parent=1 // pred_check_branch
      %16 = sbr.rel (0) target = $region13
    $region12: #{tpu_custom_call.1} parent=1 // pred_region
      _
    $region13: #{tpu_custom_call.1} parent=1 // pred_fallthru
      _
    // Predicated region
    $region14: #{tpu_custom_call.1} parent=1 // pred_check
      _
    $region15: #{tpu_custom_call.1} parent=1 // pred_check_branch
      %18 = sbr.rel (0) target = $region17
    $region16: #{tpu_custom_call.1} parent=1 // pred_region
      _
    $region17: #{tpu_custom_call.1} parent=1 // pred_fallthru
      _
    // Predicated region
    $region18: #{tpu_custom_call.1} parent=1 // pred_check
      _
    $region19: #{tpu_custom_call.1} parent=1 // pred_check_branch
      %20 = sbr.rel (0) target = $region21
    $region20: #{tpu_custom_call.1} parent=1 // pred_region
      _
    $region21: #{tpu_custom_call.1} parent=1 // pred_fallthru
      _
    %v21 = vld [vmem:[%s0] sm:$0xff]
    %v22 = vld [vmem:[%s1] sm:$0xff]
    %v23 = vld [vmem:[%s1 + $0x8] sm:$0xff]
    %v24 = vld [vmem:[%s1 + $0x10] sm:$0xff]
    %v25 = vld [vmem:[%s1 + $0x18] sm:$0xff]
    %v26 = vld [vmem:[%s1 + $0x20] sm:$0xff]
    %v27 = vld [vmem:[%s1 + $0x28] sm:$0xff]
    %v28 = vld [vmem:[%s1 + $0x30] sm:$0xff]
    %v29 = vld [vmem:[%s1 + $0x38] sm:$0xff]
    %v30 = vld [vmem:[%s1 + $0x40] sm:$0xff]
    %v31 = vld [vmem:[%s1 + $0x48] sm:$0xff]
    %v32 = vld [vmem:[%s1 + $0x50] sm:$0xff]
    %v33 = vld [vmem:[%s1 + $0x58] sm:$0xff]
    %v34 = vld [vmem:[%s1 + $0x60] sm:$0xff]
    %v35 = vld [vmem:[%s1 + $0x68] sm:$0xff]
    %v36 = vld [vmem:[%s1 + $0x70] sm:$0xff]
    %v37 = vld [vmem:[%s1 + $0x78] sm:$0xff]
    %v38 = vld [vmem:[%s1 + $0x80] sm:$0xff]
    %v39 = vld [vmem:[%s1 + $0x88] sm:$0xff]
    %v40 = vld [vmem:[%s1 + $0x90] sm:$0xff]
    %v41 = vld [vmem:[%s1 + $0x98] sm:$0xff]
    %v42 = vld [vmem:[%s1 + $0xa0] sm:$0xff]
    %v43 = vld [vmem:[%s1 + $0xa8] sm:$0xff]
    %v44 = vld [vmem:[%s1 + $0xb0] sm:$0xff]
    %v45 = vld [vmem:[%s1 + $0xb8] sm:$0xff]
    %v46 = vld [vmem:[%s1 + $0xc0] sm:$0xff]
    %v47 = vld [vmem:[%s1 + $0xc8] sm:$0xff]
    %v48 = vld [vmem:[%s1 + $0xd0] sm:$0xff]
    %v49 = vld [vmem:[%s1 + $0xd8] sm:$0xff]
    %v50 = vld [vmem:[%s1 + $0xe0] sm:$0xff]
    %v51 = vld [vmem:[%s1 + $0xe8] sm:$0xff]
    %v52 = vld [vmem:[%s1 + $0xf0] sm:$0xff]
    %v53 = vld [vmem:[%s1 + $0xf8] sm:$0xff]
    %v54 = vld [vmem:[%s1 + $0x100] sm:$0xff]
    %v55 = vld [vmem:[%s1 + $0x108] sm:$0xff]
    %v56 = vld [vmem:[%s1 + $0x110] sm:$0xff]
    %v57 = vld [vmem:[%s1 + $0x118] sm:$0xff]
    %v58 = vld [vmem:[%s1 + $0x120] sm:$0xff]
    %v59 = vld [vmem:[%s1 + $0x128] sm:$0xff]
    %v60 = vld [vmem:[%s1 + $0x130] sm:$0xff]
    %v61 = vld [vmem:[%s1 + $0x138] sm:$0xff]
    %v62 = vld [vmem:[%s1 + $0x140] sm:$0xff]
    %v63 = vld [vmem:[%s1 + $0x148] sm:$0xff]
    %v64 = vld [vmem:[%s1 + $0x150] sm:$0xff]
    %v65 = vld [vmem:[%s1 + $0x158] sm:$0xff]
    %v66 = vld [vmem:[%s1 + $0x160] sm:$0xff]
    %v67 = vld [vmem:[%s1 + $0x168] sm:$0xff]
    %v68 = vld [vmem:[%s1 + $0x170] sm:$0xff]
    %v69 = vld [vmem:[%s1 + $0x178] sm:$0xff]
    %v70 = vld [vmem:[%s1 + $0x180] sm:$0xff]
    %v71 = vld [vmem:[%s1 + $0x188] sm:$0xff]
    %v72 = vld [vmem:[%s1 + $0x190] sm:$0xff]
    %v73 = vld [vmem:[%s1 + $0x198] sm:$0xff]
    %v74 = vld [vmem:[%s1 + $0x1a0] sm:$0xff]
    %v75 = vld [vmem:[%s1 + $0x1a8] sm:$0xff]
    %v76 = vld [vmem:[%s1 + $0x1b0] sm:$0xff]
    %v77 = vld [vmem:[%s1 + $0x1b8] sm:$0xff]
    %v78 = vld [vmem:[%s1 + $0x1c0] sm:$0xff]
    %v79 = vld [vmem:[%s1 + $0x1c8] sm:$0xff]
    %v80 = vld [vmem:[%s1 + $0x1d0] sm:$0xff]
    %v81 = vld [vmem:[%s1 + $0x1d8] sm:$0xff]
    %v82 = vld [vmem:[%s1 + $0x1e0] sm:$0xff]
    %v83 = vld [vmem:[%s1 + $0x1e8] sm:$0xff]
    %v84 = vld [vmem:[%s1 + $0x1f0] sm:$0xff]
    %v85 = vld [vmem:[%s1 + $0x1f8] sm:$0xff]
    %v86 = vld [vmem:[%s2] sm:$0x1]
    %v88 = vlaneseq
    %v89 = vshrl.u32 %v88, 7
    %v90 = vsub.s32 0, %v89
    %v91 = vrot.slane %v86, %v90
    %v94 = vcombine.high %v21, %v21
    %v96 = vunpack.c.l.s4 1983009808
    %v97 = vunpack.c.0.s8 %v96
    %v98 = vlaneseq
    %v99 = vshrl.u32 %v98, 7
    %v100 = vsub.s32 %v97, %v99
    %v101 = vrot.slane %v21, %v100
    %v103 = vunpack.c.l.s4 1983009808
    %v104 = vunpack.c.0.s8 %v103
    %v105 = vlaneseq
    %v106 = vshrl.u32 %v105, 7
    %v107 = vsub.s32 %v104, %v106
    %v108 = vrot.slane %v94, %v107
    %v109 = vcombine.high %v101, %v101
    %v110 = vcombine.high %v108, %v108
    %115 = vmatprep.subr.mxu0 0.0
    %116 = vmatpush1.msra.mxu0 %v22
    %117 = vmatprep.subr.mxu0 0.0
    %118 = vmatpush1.msra.mxu0 %v23
    %119 = vmatprep.subr.mxu0 0.0
    %120 = vmatpush1.msra.mxu0 %v24
    %121 = vmatprep.subr.mxu0 0.0
    %122 = vmatpush1.msra.mxu0 %v25
    %123 = vmatprep.subr.mxu0 0.0
    %124 = vmatpush1.msra.mxu0 %v26
    %125 = vmatprep.subr.mxu0 0.0
    %126 = vmatpush1.msra.mxu0 %v27
    %127 = vmatprep.subr.mxu0 0.0
    %128 = vmatpush1.msra.mxu0 %v28
    %129 = vmatprep.subr.mxu0 0.0
    %130 = vmatpush1.msra.mxu0 %v29
    %131 = vmatprep.subr.mxu0 0.0
    %132 = vmatpush1.msra.mxu0 %v30
    %133 = vmatprep.subr.mxu0 0.0
    %134 = vmatpush1.msra.mxu0 %v31
    %135 = vmatprep.subr.mxu0 0.0
    %136 = vmatpush1.msra.mxu0 %v32
    %137 = vmatprep.subr.mxu0 0.0
    %138 = vmatpush1.msra.mxu0 %v33
    %139 = vmatprep.subr.mxu0 0.0
    %140 = vmatpush1.msra.mxu0 %v34
    %141 = vmatprep.subr.mxu0 0.0
    %142 = vmatpush1.msra.mxu0 %v35
    %143 = vmatprep.subr.mxu0 0.0
    %144 = vmatpush1.msra.mxu0 %v36
    %145 = vmatprep.subr.mxu0 0.0
    %146 = vmatpush1.msra.mxu0 %v37
    %147 = vmatprep.subr.mxu0 0.0
    %148 = vmatpush1.msra.mxu0 %v38
    %149 = vmatprep.subr.mxu0 0.0
    %150 = vmatpush1.msra.mxu0 %v39
    %151 = vmatprep.subr.mxu0 0.0
    %152 = vmatpush1.msra.mxu0 %v40
    %153 = vmatprep.subr.mxu0 0.0
    %154 = vmatpush1.msra.mxu0 %v41
    %155 = vmatprep.subr.mxu0 0.0
    %156 = vmatpush1.msra.mxu0 %v42
    %157 = vmatprep.subr.mxu0 0.0
    %158 = vmatpush1.msra.mxu0 %v43
    %159 = vmatprep.subr.mxu0 0.0
    %160 = vmatpush1.msra.mxu0 %v44
    %161 = vmatprep.subr.mxu0 0.0
    %162 = vmatpush1.msra.mxu0 %v45
    %163 = vmatprep.subr.mxu0 0.0
    %164 = vmatpush1.msra.mxu0 %v46
    %165 = vmatprep.subr.mxu0 0.0
    %166 = vmatpush1.msra.mxu0 %v47
    %167 = vmatprep.subr.mxu0 0.0
    %168 = vmatpush1.msra.mxu0 %v48
    %169 = vmatprep.subr.mxu0 0.0
    %170 = vmatpush1.msra.mxu0 %v49
    %171 = vmatprep.subr.mxu0 0.0
    %172 = vmatpush1.msra.mxu0 %v50
    %173 = vmatprep.subr.mxu0 0.0
    %174 = vmatpush1.msra.mxu0 %v51
    %175 = vmatprep.subr.mxu0 0.0
    %176 = vmatpush1.msra.mxu0 %v52
    %177 = vmatprep.subr.mxu0 0.0
    %178 = vmatpush1.msra.mxu0 %v53
    %179 = vmatprep.mubr.f32.mxu0 %v109
    %180 = vmatmul.mubr.f32.gmra.mrb[0].mxu0 %v101
    %v181 = vpop.f32.mrb[0].mxu0
    %v182 = vadd.f32 %v91, %v181
    %v183 = vpop.f32.mrb[0].mxu0
    %184 = vdwg.mxu0
    %185 = vmatprep.subr.mxu0 0.0
    %186 = vmatpush1.msra.mxu0 %v54
    %187 = vmatprep.subr.mxu0 0.0
    %188 = vmatpush1.msra.mxu0 %v55
    %189 = vmatprep.subr.mxu0 0.0
    %190 = vmatpush1.msra.mxu0 %v56
    %191 = vmatprep.subr.mxu0 0.0
    %192 = vmatpush1.msra.mxu0 %v57
    %193 = vmatprep.subr.mxu0 0.0
    %194 = vmatpush1.msra.mxu0 %v58
    %195 = vmatprep.subr.mxu0 0.0
    %196 = vmatpush1.msra.mxu0 %v59
    %197 = vmatprep.subr.mxu0 0.0
    %198 = vmatpush1.msra.mxu0 %v60
    %199 = vmatprep.subr.mxu0 0.0
    %200 = vmatpush1.msra.mxu0 %v61
    %201 = vmatprep.subr.mxu0 0.0
    %202 = vmatpush1.msra.mxu0 %v62
    %203 = vmatprep.subr.mxu0 0.0
    %204 = vmatpush1.msra.mxu0 %v63
    %205 = vmatprep.subr.mxu0 0.0
    %206 = vmatpush1.msra.mxu0 %v64
    %207 = vmatprep.subr.mxu0 0.0
    %208 = vmatpush1.msra.mxu0 %v65
    %209 = vmatprep.subr.mxu0 0.0
    %210 = vmatpush1.msra.mxu0 %v66
    %211 = vmatprep.subr.mxu0 0.0
    %212 = vmatpush1.msra.mxu0 %v67
    %213 = vmatprep.subr.mxu0 0.0
    %214 = vmatpush1.msra.mxu0 %v68
    %215 = vmatprep.subr.mxu0 0.0
    %216 = vmatpush1.msra.mxu0 %v69
    %217 = vmatprep.subr.mxu0 0.0
    %218 = vmatpush1.msra.mxu0 %v70
    %219 = vmatprep.subr.mxu0 0.0
    %220 = vmatpush1.msra.mxu0 %v71
    %221 = vmatprep.subr.mxu0 0.0
    %222 = vmatpush1.msra.mxu0 %v72
    %223 = vmatprep.subr.mxu0 0.0
    %224 = vmatpush1.msra.mxu0 %v73
    %225 = vmatprep.subr.mxu0 0.0
    %226 = vmatpush1.msra.mxu0 %v74
    %227 = vmatprep.subr.mxu0 0.0
    %228 = vmatpush1.msra.mxu0 %v75
    %229 = vmatprep.subr.mxu0 0.0
    %230 = vmatpush1.msra.mxu0 %v76
    %231 = vmatprep.subr.mxu0 0.0
    %232 = vmatpush1.msra.mxu0 %v77
    %233 = vmatprep.subr.mxu0 0.0
    %234 = vmatpush1.msra.mxu0 %v78
    %235 = vmatprep.subr.mxu0 0.0
    %236 = vmatpush1.msra.mxu0 %v79
    %237 = vmatprep.subr.mxu0 0.0
    %238 = vmatpush1.msra.mxu0 %v80
    %239 = vmatprep.subr.mxu0 0.0
    %240 = vmatpush1.msra.mxu0 %v81
    %241 = vmatprep.subr.mxu0 0.0
    %242 = vmatpush1.msra.mxu0 %v82
    %243 = vmatprep.subr.mxu0 0.0
    %244 = vmatpush1.msra.mxu0 %v83
    %245 = vmatprep.subr.mxu0 0.0
    %246 = vmatpush1.msra.mxu0 %v84
    %247 = vmatprep.subr.mxu0 0.0
    %248 = vmatpush1.msra.mxu0 %v85
    %249 = vmatprep.mubr.f32.mxu0 %v110
    %250 = vmatmul.mubr.f32.gmra.mrb[0].mxu0 %v108
    %v251 = vpop.f32.mrb[0].mxu0
    %v252 = vadd.f32 %v182, %v251
    %v253 = vpop.f32.mrb[0].mxu0
    %254 = vdwg.mxu0
    %v255 = vmax.f32 %v252, 0.0
    %v256 = vld [vmem:[%s3] sm:$0xff]
    %v257 = vld [vmem:[%s3 + $0x8] sm:$0xff]
    %v258 = vld [vmem:[%s3 + $0x10] sm:$0xff]
    %v259 = vld [vmem:[%s3 + $0x18] sm:$0xff]
    %v260 = vld [vmem:[%s4] sm:$0x1]
    %v262 = vlaneseq
    %v263 = vshrl.u32 %v262, 7
    %v264 = vsub.s32 0, %v263
    %v265 = vrot.slane %v260, %v264
    %vm267 = vcmask 261120
    %v269 = vsel %vm267, %v255, 0
    %271 = vmatprep.subr.mxu0 0.0
    %272 = vmatpush1.msra.mxu0 %v256
    %273 = vmatprep.subr.mxu0 0.0
    %274 = vmatpush1.msra.mxu0 %v257
    %275 = vmatprep.subr.mxu0 0.0
    %276 = vmatpush1.msra.mxu0 %v258
    %277 = vmatprep.subr.mxu0 0.0
    %278 = vmatpush1.msra.mxu0 %v259
    %279 = vmatprep.subr.mxu0 0.0
    %280 = vmatpush1.msra.mxu0 0.0
    %281 = vmatprep.subr.mxu0 0.0
    %282 = vmatpush1.msra.mxu0 0.0
    %283 = vmatprep.subr.mxu0 0.0
    %284 = vmatpush1.msra.mxu0 0.0
    %285 = vmatprep.subr.mxu0 0.0
    %286 = vmatpush1.msra.mxu0 0.0
    %287 = vmatprep.subr.mxu0 0.0
    %288 = vmatpush1.msra.mxu0 0.0
    %289 = vmatprep.subr.mxu0 0.0
    %290 = vmatpush1.msra.mxu0 0.0
    %291 = vmatprep.subr.mxu0 0.0
    %292 = vmatpush1.msra.mxu0 0.0
    %293 = vmatprep.subr.mxu0 0.0
    %294 = vmatpush1.msra.mxu0 0.0
    %295 = vmatprep.subr.mxu0 0.0
    %296 = vmatpush1.msra.mxu0 0.0
    %297 = vmatprep.subr.mxu0 0.0
    %298 = vmatpush1.msra.mxu0 0.0
    %299 = vmatprep.subr.mxu0 0.0
    %300 = vmatpush1.msra.mxu0 0.0
    %301 = vmatprep.subr.mxu0 0.0
    %302 = vmatpush1.msra.mxu0 0.0
    %303 = vmatprep.subr.mxu0 0.0
    %304 = vmatpush1.msra.mxu0 0.0
    %305 = vmatprep.subr.mxu0 0.0
    %306 = vmatpush1.msra.mxu0 0.0
    %307 = vmatprep.subr.mxu0 0.0
    %308 = vmatpush1.msra.mxu0 0.0
    %309 = vmatprep.subr.mxu0 0.0
    %310 = vmatpush1.msra.mxu0 0.0
    %311 = vmatprep.subr.mxu0 0.0
    %312 = vmatpush1.msra.mxu0 0.0
    %313 = vmatprep.subr.mxu0 0.0
    %314 = vmatpush1.msra.mxu0 0.0
    %315 = vmatprep.subr.mxu0 0.0
    %316 = vmatpush1.msra.mxu0 0.0
    %317 = vmatprep.subr.mxu0 0.0
    %318 = vmatpush1.msra.mxu0 0.0
    %319 = vmatprep.subr.mxu0 0.0
    %320 = vmatpush1.msra.mxu0 0.0
    %321 = vmatprep.subr.mxu0 0.0
    %322 = vmatpush1.msra.mxu0 0.0
    %323 = vmatprep.subr.mxu0 0.0
    %324 = vmatpush1.msra.mxu0 0.0
    %325 = vmatprep.subr.mxu0 0.0
    %326 = vmatpush1.msra.mxu0 0.0
    %327 = vmatprep.subr.mxu0 0.0
    %328 = vmatpush1.msra.mxu0 0.0
    %329 = vmatprep.subr.mxu0 0.0
    %330 = vmatpush1.msra.mxu0 0.0
    %331 = vmatprep.subr.mxu0 0.0
    %332 = vmatpush1.msra.mxu0 0.0
    %333 = vmatprep.subr.mxu0 0.0
    %334 = vmatpush1.msra.mxu0 0.0
    %335 = vmatprep.mubr.f32.mxu0 0.0
    %336 = vmatmul.mubr.f32.gmra.mrb[0].mxu0 %v269
    %v337 = vpop.f32.mrb[0].mxu0
    %v338 = vadd.f32 %v265, %v337
    %v339 = vpop.f32.mrb[0].mxu0
    %340 = vdwg.mxu0
    %341 = vst [vmem:[#allocation2] sm:$0x3] %v338
    // Predicated region
    $region22: #{tpu_custom_call.1} parent=1 // pred_check
      _
    $region23: #{tpu_custom_call.1} parent=1 // pred_check_branch
      %343 = sbr.rel (0) target = $region25
    $region24: #{tpu_custom_call.1} parent=1 // pred_region
      %s345 = ssub.s32 32, 32
      %346 = vsyncadd [#allocation3], %s345
      %s348 = sshll.u32 [#allocation2], 4
      %s349 = int_to_ptr.vmem [resolvable:$true] %s348
      %351 = dma.vmem_to_hbm [thread:$0]  %s349, 32, %s5, [#allocation3]
    $region25: #{tpu_custom_call.1} parent=1 // pred_fallthru
      _
    // Predicated region
    $region26: #{tpu_custom_call.1} parent=1 // pred_check
      _
    $region27: #{tpu_custom_call.1} parent=1 // pred_check_branch
      %353 = sbr.rel (0) target = $region29
    $region28: #{tpu_custom_call.1} parent=1 // pred_region
      %354 = dma.done [#allocation3], 32
    $region29: #{tpu_custom_call.1} parent=1 // pred_fallthru
      _
    %355 = vsyncpa [#allocation3], 1

</llo_original>
